<compile_context>
chip_gen: v6e
topology: v6e:2x2x1
jax: 0.10.0
libtpu: 0.0.40
codegen_flags: <defaults>
</compile_context>

<pallas_src>
import functools

import jax
import jax.numpy as jnp
from jax.experimental import pallas as pl
from jax.experimental.pallas import tpu as pltpu


# ---------------------------------------------------------------------------
# Kernel
# ---------------------------------------------------------------------------
def _final_classifier_kernel(x_ref, w1_ref, b1_ref, w2_ref, b2_ref, o_ref,
                             acc_ref):
    """One (batch-tile, hidden-tile) grid step.

    fc1 slice -> bias + ReLU -> partial fc2, accumulated across the hidden
    ("arbitrary") grid axis in an f32 VMEM scratch; bias2 + downcast on the
    last hidden step.  Dropout is identity (eval mode).
    """
    h_step = pl.program_id(1)

    @pl.when(h_step == 0)
    def _():
        acc_ref[...] = jnp.zeros_like(acc_ref)

    # fc1 on the MXU: (bb, Dp) @ (Dp, tH) with f32 accumulation.
    h = jnp.dot(x_ref[...], w1_ref[...], preferred_element_type=jnp.float32)
    # Bias + ReLU in f32 (elementwise over H, so the H decomposition is exact).
    h = jnp.maximum(h + b1_ref[...], 0.0)
    # Dropout: identity in eval mode.
    # Partial fc2 on the MXU: (bb, tH) @ (tH, Cp), accumulated in f32.
    acc_ref[...] += jnp.dot(h.astype(w2_ref.dtype), w2_ref[...],
                            preferred_element_type=jnp.float32)

    @pl.when(h_step == pl.num_programs(1) - 1)
    def _():
        o_ref[...] = (acc_ref[...] + b2_ref[...]).astype(o_ref.dtype)


# ---------------------------------------------------------------------------
# Tiling helpers
# ---------------------------------------------------------------------------
def _round_up(n, m):
    return ((n + m - 1) // m) * m


def _cdiv(a, b):
    return -(-a // b)


def _pick_batch_tile(B, Dp, Cp, itemsize, block_b):
    """Multiple of 16 (bf16 sublane packing), VMEM-bounded, and >= 2 grid
    steps when B > 16 so v7x's two TensorCores both get work."""
    bb = min(block_b, _round_up(B, 16))
    # Keep 2x(x tile) + 2x(out tile) + f32 acc under ~8 MiB so the weight
    # tiles own the VMEM budget.
    per_row = 2 * Dp * itemsize + 3 * Cp * 4
    bb = max(16, min(bb, ((8 << 20) // per_row) // 16 * 16))
    if B > 16 and _cdiv(B, bb) < 2:
        bb = _round_up(_cdiv(B, 2), 16)
    return bb


def _pick_h_tile(Hp, Dp, Cp, itemsize, budget_bytes=24 << 20, max_tile=None):
    """Hidden-dim tile dividing Hp: prefer multiples of 512 (MXU-friendly on
    the 256-wide v6e/v7x arrays), then 256, then 128, sized so the
    double-buffered W1/W2/b1 tiles fit the budget."""
    per_h = 2 * ((Dp + Cp) * itemsize + 4)
    cap = Hp if max_tile is None else min(Hp, _round_up(max_tile, 128))
    max_th = max(128, min(cap, (budget_bytes // per_h) // 128 * 128))
    if max_th >= Hp:
        return Hp
    for align in (512, 256, 128):
        th = (max_th // align) * align
        while th >= align:
            if Hp % th == 0:
                return th
            th -= align
    return 128


def _vmem_limit_bytes(bb, Dp, tH, Cp, itemsize):
    x_tile = bb * Dp * itemsize
    w1_tile = Dp * tH * itemsize
    w2_tile = tH * Cp * itemsize
    b1_tile = 8 * tH * 4          # (1, tH) f32, sublane-padded
    b2_tile = 8 * Cp * 4
    o_tile = bb * Cp * 4
    acc = bb * Cp * 4
    pipelined = 2 * (x_tile + w1_tile + w2_tile + b1_tile + b2_tile + o_tile)
    need = int((pipelined + acc) * 1.5) + (4 << 20)
    return max(16 << 20, min(need, 128 << 20))


# ---------------------------------------------------------------------------
# Hot-path forward (weights already padded / cast)
# ---------------------------------------------------------------------------
@functools.partial(
    jax.jit,
    static_argnames=("orig_d", "orig_c", "block_b", "compute_dtype",
                     "max_hidden_tile"))
def _final_classifier_forward(x, w1p, b1p, w2p, b2p, *, orig_d, orig_c,
                              block_b, compute_dtype, max_hidden_tile):
    B, D = x.shape
    assert D == orig_d, "input feature dim inconsistent with the weights"
    Dp, Hp = w1p.shape
    Cp = w2p.shape[1]
    cd = compute_dtype
    itemsize = jnp.dtype(cd).itemsize

    bb = _pick_batch_tile(B, Dp, Cp, itemsize, block_b)
    Bp = _round_up(B, bb)
    tH = _pick_h_tile(Hp, Dp, Cp, itemsize, max_tile=max_hidden_tile)
    n_b, n_h = Bp // bb, Hp // tH

    # Hot-path x handling: cast / pad only when actually needed.
    if x.dtype != cd:
        x = x.astype(cd)
    if (Bp, Dp) != (B, D):
        x = jnp.zeros((Bp, Dp), cd).at[:B, :D].set(x)

    cost = pl.CostEstimate(
        flops=2 * Bp * (Dp * Hp + Hp * Cp),
        transcendentals=0,
        bytes_accessed=(Bp * Dp * itemsize
                        + n_b * (w1p.size + w2p.size) * itemsize
                        + n_b * (b1p.size + b2p.size) * 4
                        + Bp * Cp * 4),
    )

    out = pl.pallas_call(
        _final_classifier_kernel,
        out_shape=jax.ShapeDtypeStruct((Bp, Cp), jnp.float32),
        grid_spec=pltpu.PrefetchScalarGridSpec(
            num_scalar_prefetch=0,
            grid=(n_b, n_h),
            in_specs=[
                pl.BlockSpec((bb, Dp), lambda i, h: (i, 0)),   # x (resident over h)
                pl.BlockSpec((Dp, tH), lambda i, h: (0, h)),   # W1 tile
                pl.BlockSpec((1, tH), lambda i, h: (0, h)),    # b1 tile
                pl.BlockSpec((tH, Cp), lambda i, h: (h, 0)),   # W2 tile
                pl.BlockSpec((1, Cp), lambda i, h: (0, 0)),    # b2 (constant)
            ],
            out_specs=pl.BlockSpec((bb, Cp), lambda i, h: (i, 0)),  # lane-dense
            scratch_shapes=[pltpu.VMEM((bb, Cp), jnp.float32)],
        ),
        compiler_params=pltpu.CompilerParams(
            dimension_semantics=("parallel", "arbitrary"),
            vmem_limit_bytes=_vmem_limit_bytes(bb, Dp, tH, Cp, itemsize),
        ),
        cost_estimate=cost,
    )(x, w1p, b1p, w2p, b2p)

    return out[:B, :orig_c]


# ---------------------------------------------------------------------------
# User-facing wrappers
# ---------------------------------------------------------------------------
class FinalClassifierPallas:
    """Eval-mode FinalClassifier (fc1 -> ReLU -> dropout(id) -> fc2).

    Pads every lane dim to a multiple of 128 and casts the weights to the
    compute dtype exactly once at construction, so the per-call hot path only
    moves x and the output (the dominant cost for small-batch inference).
    """

    def __init__(self, w1, b1, w2, b2, *, compute_dtype=jnp.bfloat16,
                 block_b=512, max_hidden_tile=None):
        w1 = jnp.asarray(w1)
        w2 = jnp.asarray(w2)
        D, H = w1.shape
        Hw, C = w2.shape
        assert H == Hw, "fc1/fc2 hidden dims inconsistent"
        Dp, Hp, Cp = _round_up(D, 128), _round_up(H, 128), _round_up(C, 128)
        cd = compute_dtype
        f32 = jnp.float32
        self.w1p = jnp.zeros((Dp, Hp), cd).at[:D, :H].set(w1.astype(cd))
        self.b1p = jnp.zeros((1, Hp), f32).at[:, :H].set(
            jnp.reshape(jnp.asarray(b1), (1, H)).astype(f32))
        self.w2p = jnp.zeros((Hp, Cp), cd).at[:H, :C].set(w2.astype(cd))
        self.b2p = jnp.zeros((1, Cp), f32).at[:, :C].set(
            jnp.reshape(jnp.asarray(b2), (1, C)).astype(f32))
        self.in_features, self.hidden_dim, self.num_classes = D, H, C
        self.compute_dtype = cd
        self.block_b = block_b
        self.max_hidden_tile = max_hidden_tile

    def __call__(self, x):
        return _final_classifier_forward(
            x, self.w1p, self.b1p, self.w2p, self.b2p,
            orig_d=self.in_features, orig_c=self.num_classes,
            block_b=self.block_b, compute_dtype=self.compute_dtype,
            max_hidden_tile=self.max_hidden_tile)


def final_classifier(x, w1, b1, w2, b2, *, compute_dtype=jnp.bfloat16,
                     block_b=512):
    """One-shot convenience wrapper (pays the weight pad/cast per call;
    prefer FinalClassifierPallas for repeated inference)."""
    return FinalClassifierPallas(
        w1, b1, w2, b2, compute_dtype=compute_dtype, block_b=block_b)(x)


def _reference(x, w1, b1, w2, b2, compute_dtype=jnp.bfloat16):
    """Pure-JAX reference with the same quantization as the kernel
    (compute-dtype operands, f32 accumulation / epilogue)."""
    f32 = jnp.float32
    xc = x.astype(compute_dtype).astype(f32)
    w1c = w1.astype(compute_dtype).astype(f32)
    w2c = w2.astype(compute_dtype).astype(f32)
    h = jnp.maximum(xc @ w1c + b1.reshape(1, -1).astype(f32), 0.0)
    h = h.astype(compute_dtype).astype(f32)
    return h @ w2c + b2.reshape(1, -1).astype(f32)


# ---------------------------------------------------------------------------
# Self-test
# ---------------------------------------------------------------------------
if __name__ == "__main__":
    keys = jax.random.split(jax.random.PRNGKey(0), 10)

    # --- Test 1: small module-like shapes, single grid step -------------
    B, D_IN, HID, NCLS = 8, 32, 64, 8
    lim1, lim2 = 1.0 / (D_IN ** 0.5), 1.0 / (HID ** 0.5)
    x = jax.random.normal(keys[0], (B, D_IN), dtype=jnp.float32)
    w1 = jax.random.uniform(keys[1], (D_IN, HID), jnp.float32, -lim1, lim1)
    b1 = jax.random.uniform(keys[2], (HID,), jnp.float32, -lim1, lim1)
    w2 = jax.random.uniform(keys[3], (HID, NCLS), jnp.float32, -lim2, lim2)
    b2 = jax.random.uniform(keys[4], (NCLS,), jnp.float32, -lim2, lim2)

    model = FinalClassifierPallas(w1, b1, w2, b2)   # bf16 compute, f32 accum
    out = jax.block_until_ready(model(x))
    ref = _reference(x, w1, b1, w2, b2)
    assert out.shape == (B, NCLS)
    assert jnp.allclose(out, ref, atol=1e-4, rtol=1e-4), "mismatch (test 1)"

    # --- Test 2: unaligned dims, >=2 batch tiles, forced 2 hidden tiles --
    B2, D2, H2, C2 = 40, 96, 200, 10
    l1, l2 = 1.0 / (D2 ** 0.5), 1.0 / (H2 ** 0.5)
    x2 = jax.random.normal(keys[5], (B2, D2), dtype=jnp.float32)
    w1b = jax.random.uniform(keys[6], (D2, H2), jnp.float32, -l1, l1)
    b1b = jax.random.uniform(keys[7], (H2,), jnp.float32, -l1, l1)
    w2b = jax.random.uniform(keys[8], (H2, C2), jnp.float32, -l2, l2)
    b2b = jax.random.uniform(keys[9], (C2,), jnp.float32, -l2, l2)

    model2 = FinalClassifierPallas(w1b, b1b, w2b, b2b,
                                   max_hidden_tile=128)  # exercise H-accum path
    out2 = jax.block_until_ready(model2(x2))
    ref2 = _reference(x2, w1b, b1b, w2b, b2b)
    assert out2.shape == (B2, C2)
    assert jnp.allclose(out2, ref2, atol=1e-3, rtol=1e-3), "mismatch (test 2)"

    print("KERNEL_OK")
</pallas_src>

<mosaic_0001>
module attributes {stable_mosaic.version = 11 : i64} {
  func.func @_final_classifier_kernel(%arg0: i32, %arg1: i32, %arg2: memref<16x128xbf16, #tpu.memory_space<vmem>>, %arg3: memref<128x128xbf16, #tpu.memory_space<vmem>>, %arg4: memref<1x128xf32, #tpu.memory_space<vmem>>, %arg5: memref<128x128xbf16, #tpu.memory_space<vmem>>, %arg6: memref<1x128xf32, #tpu.memory_space<vmem>>, %arg7: memref<16x128xf32, #tpu.memory_space<vmem>>, %arg8: memref<16x128xf32, #tpu.memory_space<vmem>>) attributes {dimension_semantics = [#tpu.dimension_semantics<parallel>, #tpu.dimension_semantics<arbitrary>], iteration_bounds = array<i64: 1, 1>, scalar_prefetch = 0 : i64, scratch_operands = 1 : i64, tpu.core_type = #tpu.core_type<tc>, window_params = [{transform_indices = @transform_0, window_bounds = array<i64: 16, 128>}, {transform_indices = @transform_1, window_bounds = array<i64: 128, 128>}, {transform_indices = @transform_2, window_bounds = array<i64: 1, 128>}, {transform_indices = @transform_3, window_bounds = array<i64: 128, 128>}, {pipeline_mode = #tpu.pipeline_mode<synchronous>, transform_indices = @transform_4, window_bounds = array<i64: 1, 128>}, {transform_indices = @transform_5, window_bounds = array<i64: 16, 128>}]} {
    %c0_i32 = arith.constant 0 : i32
    %0 = arith.cmpi eq, %arg1, %c0_i32 : i32
    %1 = arith.extui %0 : i1 to i32
    %c0_i32_0 = arith.constant 0 : i32
    %2 = arith.cmpi ne, %1, %c0_i32_0 : i32
    scf.if %2 {
      %cst_16 = arith.constant 0.000000e+00 : f32
      %20 = vector.broadcast %cst_16 : f32 to vector<16x128xf32>
      %c0_17 = arith.constant 0 : index
      %c0_18 = arith.constant 0 : index
      %21 = vector.load %arg8[%c0_17, %c0_18] : memref<16x128xf32, #tpu.memory_space<vmem>>, vector<16x128xf32>
      tpu.vector_store %arg8[%c0_17, %c0_18], %20 {strides = array<i32>} : memref<16x128xf32, #tpu.memory_space<vmem>>, vector<16x128xf32>,
    } else {
    }
    %c0 = arith.constant 0 : index
    %c0_1 = arith.constant 0 : index
    %3 = vector.load %arg2[%c0, %c0_1] : memref<16x128xbf16, #tpu.memory_space<vmem>>, vector<16x128xbf16>
    %c0_2 = arith.constant 0 : index
    %c0_3 = arith.constant 0 : index
    %4 = vector.load %arg3[%c0_2, %c0_3] : memref<128x128xbf16, #tpu.memory_space<vmem>>, vector<128x128xbf16>
    %cst = arith.constant dense<0.000000e+00> : vector<16x128xf32>
    %5 = tpu.matmul %3, %4, %cst {dimension_numbers = #tpu.dot_dimension_numbers<[1], [0], [0], [1], [0, 0, 1, 1], [], []>} : vector<16x128xbf16>, vector<128x128xbf16>, vector<16x128xf32> -> vector<16x128xf32>
    %c0_4 = arith.constant 0 : index
    %c0_5 = arith.constant 0 : index
    %6 = vector.load %arg4[%c0_4, %c0_5] : memref<1x128xf32, #tpu.memory_space<vmem>>, vector<1x128xf32>
    %7 = vector.broadcast %6 : vector<1x128xf32> to vector<16x128xf32>
    %8 = arith.addf %5, %7 : vector<16x128xf32>
    %cst_6 = arith.constant 0.000000e+00 : f32
    %9 = vector.broadcast %cst_6 : f32 to vector<16x128xf32>
    %10 = arith.maximumf %8, %9 : vector<16x128xf32>
    %c0_7 = arith.constant 0 : index
    %c0_8 = arith.constant 0 : index
    %11 = vector.load %arg8[%c0_7, %c0_8] : memref<16x128xf32, #tpu.memory_space<vmem>>, vector<16x128xf32>
    %12 = arith.truncf %10 : vector<16x128xf32> to vector<16x128xbf16>
    %c0_9 = arith.constant 0 : index
    %c0_10 = arith.constant 0 : index
    %13 = vector.load %arg5[%c0_9, %c0_10] : memref<128x128xbf16, #tpu.memory_space<vmem>>, vector<128x128xbf16>
    %cst_11 = arith.constant dense<0.000000e+00> : vector<16x128xf32>
    %14 = tpu.matmul %12, %13, %cst_11 {dimension_numbers = #tpu.dot_dimension_numbers<[1], [0], [0], [1], [0, 0, 1, 1], [], []>} : vector<16x128xbf16>, vector<128x128xbf16>, vector<16x128xf32> -> vector<16x128xf32>
    %15 = arith.addf %11, %14 : vector<16x128xf32>
    %c0_12 = arith.constant 0 : index
    %c0_13 = arith.constant 0 : index
    %16 = vector.load %arg8[%c0_12, %c0_13] : memref<16x128xf32, #tpu.memory_space<vmem>>, vector<16x128xf32>
    tpu.vector_store %arg8[%c0_12, %c0_13], %15 {strides = array<i32>} : memref<16x128xf32, #tpu.memory_space<vmem>>, vector<16x128xf32>,
    %c0_i32_14 = arith.constant 0 : i32
    %17 = arith.cmpi eq, %arg1, %c0_i32_14 : i32
    %18 = arith.extui %17 : i1 to i32
    %c0_i32_15 = arith.constant 0 : i32
    %19 = arith.cmpi ne, %18, %c0_i32_15 : i32
    scf.if %19 {
      %c0_16 = arith.constant 0 : index
      %c0_17 = arith.constant 0 : index
      %20 = vector.load %arg8[%c0_16, %c0_17] : memref<16x128xf32, #tpu.memory_space<vmem>>, vector<16x128xf32>
      %c0_18 = arith.constant 0 : index
      %c0_19 = arith.constant 0 : index
      %21 = vector.load %arg6[%c0_18, %c0_19] : memref<1x128xf32, #tpu.memory_space<vmem>>, vector<1x128xf32>
      %22 = vector.broadcast %21 : vector<1x128xf32> to vector<16x128xf32>
      %23 = arith.addf %20, %22 : vector<16x128xf32>
      %c0_20 = arith.constant 0 : index
      %c0_21 = arith.constant 0 : index
      %24 = vector.load %arg7[%c0_20, %c0_21] : memref<16x128xf32, #tpu.memory_space<vmem>>, vector<16x128xf32>
      tpu.vector_store %arg7[%c0_20, %c0_21], %23 {strides = array<i32>} : memref<16x128xf32, #tpu.memory_space<vmem>>, vector<16x128xf32>,
    } else {
    }
    return
  }
  func.func @transform_0(%arg0: i32, %arg1: i32) -> (i32, i32) {
    %c0_i32 = arith.constant 0 : i32
    %c0_i32_0 = arith.constant 0 : i32
    return %arg0, %c0_i32 : i32, i32
  }
  func.func @transform_1(%arg0: i32, %arg1: i32) -> (i32, i32) {
    %c0_i32 = arith.constant 0 : i32
    %c0_i32_0 = arith.constant 0 : i32
    return %c0_i32, %arg1 : i32, i32
  }
  func.func @transform_2(%arg0: i32, %arg1: i32) -> (i32, i32) {
    %c0_i32 = arith.constant 0 : i32
    %c0_i32_0 = arith.constant 0 : i32
    return %c0_i32, %arg1 : i32, i32
  }
  func.func @transform_3(%arg0: i32, %arg1: i32) -> (i32, i32) {
    %c0_i32 = arith.constant 0 : i32
    %c0_i32_0 = arith.constant 0 : i32
    return %arg1, %c0_i32 : i32, i32
  }
  func.func @transform_4(%arg0: i32, %arg1: i32) -> (i32, i32) {
    %c0_i32 = arith.constant 0 : i32
    %c0_i32_0 = arith.constant 0 : i32
    %c0_i32_1 = arith.constant 0 : i32
    return %c0_i32, %c0_i32_0 : i32, i32
  }
  func.func @transform_5(%arg0: i32, %arg1: i32) -> (i32, i32) {
    %c0_i32 = arith.constant 0 : i32
    %c0_i32_0 = arith.constant 0 : i32
    return %arg0, %c0_i32 : i32, i32
  }
}

</mosaic_0001>

<llo_original>
// kernel: _final_classifier_forward.1
$region0: #{_final_classifier_forward.1}
  #allocation0 [shape = 'u32[]', space=smem, size = 0x4, offset = 0x4, fixed_abs, tag = 'smem constant byte address 0x4 - core index']
  #allocation1 [shape = 'u32[144,128]{1,0:T(1,128)}', space=vmem, size = 0x12000, scoped, tag = 'internal scratch']
  #allocation2 [shape = 'f32[16,128]{1,0:T(8,128)}', space=vmem, size = 0x2000, scoped, tag = 'scratch operand']
  %s0 = inlined_call_operand.vmem [shape: bf16[16,128], index: 0, kind: input, shape index: {}]
  %s1 = inlined_call_operand.hbm [shape: bf16[128,128], index: 1, kind: input, shape index: {}]
  %s2 = inlined_call_operand.vmem [shape: f32[1,128], index: 2, kind: input, shape index: {}]
  %s3 = inlined_call_operand.hbm [shape: bf16[128,128], index: 3, kind: input, shape index: {}]
  %s4 = inlined_call_operand.vmem [shape: f32[1,128], index: 4, kind: input, shape index: {}]
  %s5 = inlined_call_operand.vmem [shape: f32[16,128], index: 5, kind: output, shape index: {}]
  %s6 = sld [smem:[#allocation0]]
  $region46: #{_final_classifier_forward.1} parent=0
    _
  %s8 = ssub.s32 1, %s6
  %s9 = scalar_select 0, %s8, %s6
  $region1: #{_final_classifier_forward.1} parent=0
    #allocation3 [shape = 'u8[32768]{0}', space=vmem, size = 0x8000, scoped, tag = 'input window, operand 1, single buffered']
    #allocation4 [shape = 's32[1]{0}', space=sflag, size = 0x4, scoped, tag = 'scoped memory for _final_classifier_forward.1']
    #allocation5 [shape = 'u8[32768]{0}', space=vmem, size = 0x8000, scoped, tag = 'input window, operand 3, single buffered']
    #allocation6 [shape = 's32[1]{0}', space=sflag, size = 0x4, scoped, tag = 'scoped memory for _final_classifier_forward.1']
    %10 = vsyncpa [#allocation4], 0
    %11 = vsyncpa [#allocation6], 0
    // Predicated region
    $region2: #{_final_classifier_forward.1} parent=1 // pred_check
      _
    $region3: #{_final_classifier_forward.1} parent=1 // pred_check_branch
      %13 = sbr.rel (0) target = $region5
    $region4: #{_final_classifier_forward.1} parent=1 // pred_region
      _
    $region5: #{_final_classifier_forward.1} parent=1 // pred_fallthru
      _
    // Predicated region
    $region6: #{_final_classifier_forward.1} parent=1 // pred_check
      _
    $region7: #{_final_classifier_forward.1} parent=1 // pred_check_branch
      %15 = sbr.rel (0) target = $region9
    $region8: #{_final_classifier_forward.1} parent=1 // pred_region
      %s17 = ssub.s32 1024, 1024
      %18 = vsyncadd [#allocation4], %s17
      %s19 = sshll.u32 [#allocation3], 4
      %s20 = int_to_ptr.vmem [resolvable:$true] %s19
      %25 = dma.hbm_to_vmem [thread:$0]  %s1, 1024, %s20, [#allocation4], 64, 64, 4
    $region9: #{_final_classifier_forward.1} parent=1 // pred_fallthru
      _
    // Predicated region
    $region10: #{_final_classifier_forward.1} parent=1 // pred_check
      _
    $region11: #{_final_classifier_forward.1} parent=1 // pred_check_branch
      %27 = sbr.rel (0) target = $region13
    $region12: #{_final_classifier_forward.1} parent=1 // pred_region
      _
    $region13: #{_final_classifier_forward.1} parent=1 // pred_fallthru
      _
    // Predicated region
    $region14: #{_final_classifier_forward.1} parent=1 // pred_check
      _
    $region15: #{_final_classifier_forward.1} parent=1 // pred_check_branch
      %29 = sbr.rel (0) target = $region17
    $region16: #{_final_classifier_forward.1} parent=1 // pred_region
      %s31 = ssub.s32 1024, 1024
      %32 = vsyncadd [#allocation6], %s31
      %s33 = sshll.u32 [#allocation5], 4
      %s34 = int_to_ptr.vmem [resolvable:$true] %s33
      %39 = dma.hbm_to_vmem [thread:$0]  %s3, 1024, %s34, [#allocation6], 64, 64, 4
    $region17: #{_final_classifier_forward.1} parent=1 // pred_fallthru
      _
    // Predicated region
    $region18: #{_final_classifier_forward.1} parent=1 // pred_check
      _
    $region19: #{_final_classifier_forward.1} parent=1 // pred_check_branch
      %41 = sbr.rel (0) target = $region21
    $region20: #{_final_classifier_forward.1} parent=1 // pred_region
      _
    $region21: #{_final_classifier_forward.1} parent=1 // pred_fallthru
      _
    // Predicated region
    $region22: #{_final_classifier_forward.1} parent=1 // pred_check
      _
    $region23: #{_final_classifier_forward.1} parent=1 // pred_check_branch
      %43 = sbr.rel (0) target = $region25
    $region24: #{_final_classifier_forward.1} parent=1 // pred_region
      %44 = dma.done [#allocation4], 1024
    $region25: #{_final_classifier_forward.1} parent=1 // pred_fallthru
      _
    // Predicated region
    $region26: #{_final_classifier_forward.1} parent=1 // pred_check
      _
    $region27: #{_final_classifier_forward.1} parent=1 // pred_check_branch
      %46 = sbr.rel (0) target = $region29
    $region28: #{_final_classifier_forward.1} parent=1 // pred_region
      %47 = dma.done [#allocation6], 1024
    $region29: #{_final_classifier_forward.1} parent=1 // pred_fallthru
      _
    %p49 = scmp.eq.s32.totalorder 0, 0
    // Predicated region
    $region30: #{_final_classifier_forward.1} parent=1 // pred_check
      %p50 = pneg %p49
    $region31: #{_final_classifier_forward.1} parent=1 // pred_check_branch
      %52 = sbr.rel (%p50) target = $region33
    $region32: #{_final_classifier_forward.1} parent=1 // pred_region
      %53 = vst [vmem:[#allocation2] sm:$0xff] 0.0
      %54 = vst [vmem:[#allocation2 + $0x8] sm:$0xff] 0.0
    $region33: #{_final_classifier_forward.1} parent=1 // pred_fallthru
      _
    %v55 = vld [vmem:[%s0] sm:$0xf]
    %v56 = vld [vmem:[%s0 + $0x4] sm:$0xf]
    %v57 = vld [vmem:[#allocation3] sm:$0xf]
    %v58 = vld [vmem:[#allocation3 + $0x4] sm:$0xf]
    %v59 = vld [vmem:[#allocation3 + $0x8] sm:$0xf]
    %v60 = vld [vmem:[#allocation3 + $0xc] sm:$0xf]
    %v61 = vld [vmem:[#allocation3 + $0x10] sm:$0xf]
    %v62 = vld [vmem:[#allocation3 + $0x14] sm:$0xf]
    %v63 = vld [vmem:[#allocation3 + $0x18] sm:$0xf]
    %v64 = vld [vmem:[#allocation3 + $0x1c] sm:$0xf]
    %v65 = vld [vmem:[#allocation3 + $0x20] sm:$0xf]
    %v66 = vld [vmem:[#allocation3 + $0x24] sm:$0xf]
    %v67 = vld [vmem:[#allocation3 + $0x28] sm:$0xf]
    %v68 = vld [vmem:[#allocation3 + $0x2c] sm:$0xf]
    %v69 = vld [vmem:[#allocation3 + $0x30] sm:$0xf]
    %v70 = vld [vmem:[#allocation3 + $0x34] sm:$0xf]
    %v71 = vld [vmem:[#allocation3 + $0x38] sm:$0xf]
    %v72 = vld [vmem:[#allocation3 + $0x3c] sm:$0xf]
    %v73 = vld [vmem:[%s2] sm:$0x1]
    %v75 = vlaneseq
    %v76 = vshrl.u32 %v75, 7
    %v77 = vsub.s32 0, %v76
    %v78 = vrot.slane %v73, %v77
    %v82 = vunpack.c.l.b16 %v55
    %v83 = vunpack.c.l.b16 %v56
    %v84 = vpack.c.b16 %v83, %v82
    %v102 = vunpack.c.l.b16 %v57
    %v103 = vunpack.c.l.b16 %v58
    %v104 = vunpack.c.l.b16 %v59
    %v105 = vunpack.c.l.b16 %v60
    %v106 = vunpack.c.l.b16 %v61
    %v107 = vunpack.c.l.b16 %v62
    %v108 = vunpack.c.l.b16 %v63
    %v109 = vunpack.c.l.b16 %v64
    %v110 = vunpack.c.l.b16 %v65
    %v111 = vunpack.c.l.b16 %v66
    %v112 = vunpack.c.l.b16 %v67
    %v113 = vunpack.c.l.b16 %v68
    %v114 = vunpack.c.l.b16 %v69
    %v115 = vunpack.c.l.b16 %v70
    %v116 = vunpack.c.l.b16 %v71
    %v117 = vunpack.c.l.b16 %v72
    %v118 = vpack.c.b16 %v103, %v102
    %v119 = vpack.c.b16 %v105, %v104
    %v120 = vpack.c.b16 %v107, %v106
    %v121 = vpack.c.b16 %v109, %v108
    %v122 = vpack.c.b16 %v111, %v110
    %v123 = vpack.c.b16 %v113, %v112
    %v124 = vpack.c.b16 %v115, %v114
    %v125 = vpack.c.b16 %v117, %v116
    %134 = vmatprep.subr.bf16.mxu0 0
    %135 = vmatpush1.bf16.msra.mxu0 %v125
    %136 = vmatprep.subr.bf16.mxu0 0
    %137 = vmatpush1.bf16.msra.mxu0 %v124
    %138 = vmatprep.subr.bf16.mxu0 0
    %139 = vmatpush1.bf16.msra.mxu0 %v123
    %140 = vmatprep.subr.bf16.mxu0 0
    %141 = vmatpush1.bf16.msra.mxu0 %v122
    %142 = vmatprep.subr.bf16.mxu0 0
    %143 = vmatpush1.bf16.msra.mxu0 %v121
    %144 = vmatprep.subr.bf16.mxu0 0
    %145 = vmatpush1.bf16.msra.mxu0 %v120
    %146 = vmatprep.subr.bf16.mxu0 0
    %147 = vmatpush1.bf16.msra.mxu0 %v119
    %148 = vmatprep.subr.bf16.mxu0 0
    %149 = vmatpush1.bf16.msra.mxu0 %v118
    %150 = vmatprep.subr.bf16.mxu0 0
    %151 = vmatpush2.bf16.msra.mxu0 0
    %152 = vmatprep.subr.bf16.mxu0 0
    %153 = vmatpush2.bf16.msra.mxu0 0
    %154 = vmatprep.subr.bf16.mxu0 0
    %155 = vmatpush2.bf16.msra.mxu0 0
    %156 = vmatprep.subr.bf16.mxu0 0
    %157 = vmatpush2.bf16.msra.mxu0 0
    %158 = vmatprep.subr.bf16.mxu0 0
    %159 = vmatpush2.bf16.msra.mxu0 0
    %160 = vmatprep.subr.bf16.mxu0 0
    %161 = vmatpush2.bf16.msra.mxu0 0
    %162 = vmatprep.subr.bf16.mxu0 0
    %163 = vmatpush2.bf16.msra.mxu0 0
    %164 = vmatprep.subr.bf16.mxu0 0
    %165 = vmatpush2.bf16.msra.mxu0 0
    %166 = vmatprep.mubr.bf16.mxu0 0
    %167 = vmatmul.mubr.bf16.gmra.mxu0 %v84
    %v168 = vpop.f32.mrf.mxu0
    %v169 = vadd.f32 %v78, %v168
    %v170 = vpop.f32.mrf.mxu0
    %v171 = vpop.f32.mrf.mxu0
    %v172 = vadd.f32 %v78, %v171
    %v173 = vpop.f32.mrf.mxu0
    %174 = vdwg.mxu0
    %v175 = vmax.f32 %v169, 0.0
    %v176 = vmax.f32 %v172, 0.0
    %v177 = vld [vmem:[#allocation2] sm:$0xff]
    %v178 = vld [vmem:[#allocation2 + $0x8] sm:$0xff]
    %v179 = vpack.c.bf16 %v176, %v175
    %v180 = vld [vmem:[#allocation5] sm:$0xf]
    %v181 = vld [vmem:[#allocation5 + $0x4] sm:$0xf]
    %v182 = vld [vmem:[#allocation5 + $0x8] sm:$0xf]
    %v183 = vld [vmem:[#allocation5 + $0xc] sm:$0xf]
    %v184 = vld [vmem:[#allocation5 + $0x10] sm:$0xf]
    %v185 = vld [vmem:[#allocation5 + $0x14] sm:$0xf]
    %v186 = vld [vmem:[#allocation5 + $0x18] sm:$0xf]
    %v187 = vld [vmem:[#allocation5 + $0x1c] sm:$0xf]
    %v188 = vld [vmem:[#allocation5 + $0x20] sm:$0xf]
    %v189 = vld [vmem:[#allocation5 + $0x24] sm:$0xf]
    %v190 = vld [vmem:[#allocation5 + $0x28] sm:$0xf]
    %v191 = vld [vmem:[#allocation5 + $0x2c] sm:$0xf]
    %v192 = vld [vmem:[#allocation5 + $0x30] sm:$0xf]
    %v193 = vld [vmem:[#allocation5 + $0x34] sm:$0xf]
    %v194 = vld [vmem:[#allocation5 + $0x38] sm:$0xf]
    %v195 = vld [vmem:[#allocation5 + $0x3c] sm:$0xf]
    %v212 = vunpack.c.l.b16 %v180
    %v213 = vunpack.c.l.b16 %v181
    %v214 = vunpack.c.l.b16 %v182
    %v215 = vunpack.c.l.b16 %v183
    %v216 = vunpack.c.l.b16 %v184
    %v217 = vunpack.c.l.b16 %v185
    %v218 = vunpack.c.l.b16 %v186
    %v219 = vunpack.c.l.b16 %v187
    %v220 = vunpack.c.l.b16 %v188
    %v221 = vunpack.c.l.b16 %v189
    %v222 = vunpack.c.l.b16 %v190
    %v223 = vunpack.c.l.b16 %v191
    %v224 = vunpack.c.l.b16 %v192
    %v225 = vunpack.c.l.b16 %v193
    %v226 = vunpack.c.l.b16 %v194
    %v227 = vunpack.c.l.b16 %v195
    %v228 = vpack.c.b16 %v213, %v212
    %v229 = vpack.c.b16 %v215, %v214
    %v230 = vpack.c.b16 %v217, %v216
    %v231 = vpack.c.b16 %v219, %v218
    %v232 = vpack.c.b16 %v221, %v220
    %v233 = vpack.c.b16 %v223, %v222
    %v234 = vpack.c.b16 %v225, %v224
    %v235 = vpack.c.b16 %v227, %v226
    %244 = vmatprep.subr.bf16.mxu0 0
    %245 = vmatpush1.bf16.msra.mxu0 %v235
    %246 = vmatprep.subr.bf16.mxu0 0
    %247 = vmatpush1.bf16.msra.mxu0 %v234
    %248 = vmatprep.subr.bf16.mxu0 0
    %249 = vmatpush1.bf16.msra.mxu0 %v233
    %250 = vmatprep.subr.bf16.mxu0 0
    %251 = vmatpush1.bf16.msra.mxu0 %v232
    %252 = vmatprep.subr.bf16.mxu0 0
    %253 = vmatpush1.bf16.msra.mxu0 %v231
    %254 = vmatprep.subr.bf16.mxu0 0
    %255 = vmatpush1.bf16.msra.mxu0 %v230
    %256 = vmatprep.subr.bf16.mxu0 0
    %257 = vmatpush1.bf16.msra.mxu0 %v229
    %258 = vmatprep.subr.bf16.mxu0 0
    %259 = vmatpush1.bf16.msra.mxu0 %v228
    %260 = vmatprep.subr.bf16.mxu0 0
    %261 = vmatpush2.bf16.msra.mxu0 0
    %262 = vmatprep.subr.bf16.mxu0 0
    %263 = vmatpush2.bf16.msra.mxu0 0
    %264 = vmatprep.subr.bf16.mxu0 0
    %265 = vmatpush2.bf16.msra.mxu0 0
    %266 = vmatprep.subr.bf16.mxu0 0
    %267 = vmatpush2.bf16.msra.mxu0 0
    %268 = vmatprep.subr.bf16.mxu0 0
    %269 = vmatpush2.bf16.msra.mxu0 0
    %270 = vmatprep.subr.bf16.mxu0 0
    %271 = vmatpush2.bf16.msra.mxu0 0
    %272 = vmatprep.subr.bf16.mxu0 0
    %273 = vmatpush2.bf16.msra.mxu0 0
    %274 = vmatprep.subr.bf16.mxu0 0
    %275 = vmatpush2.bf16.msra.mxu0 0
    %276 = vmatprep.mubr.bf16.mxu0 0
    %277 = vmatmul.mubr.bf16.gmra.mxu0 %v179
    %v278 = vpop.f32.mrf.mxu0
    %v279 = vadd.f32 0.0, %v278
    %v280 = vpop.f32.mrf.mxu0
    %v281 = vpop.f32.mrf.mxu0
    %v282 = vadd.f32 0.0, %v281
    %v283 = vpop.f32.mrf.mxu0
    %284 = vdwg.mxu0
    %v285 = vadd.f32 %v177, %v279
    %v286 = vadd.f32 %v178, %v282
    %287 = vst [vmem:[#allocation2] sm:$0xff] %v285
    %288 = vst [vmem:[#allocation2 + $0x8] sm:$0xff] %v286
    // Predicated region
    $region34: #{_final_classifier_forward.1} parent=1 // pred_check
      %p289 = pneg %p49
    $region35: #{_final_classifier_forward.1} parent=1 // pred_check_branch
      %291 = sbr.rel (%p289) target = $region37
    $region36: #{_final_classifier_forward.1} parent=1 // pred_region
      %v292 = vld [vmem:[#allocation2] sm:$0xff]
      %v293 = vld [vmem:[#allocation2 + $0x8] sm:$0xff]
      %v294 = vld [vmem:[%s4] sm:$0x1]
      %v296 = vlaneseq
      %v297 = vshrl.u32 %v296, 7
      %v298 = vsub.s32 0, %v297
      %v299 = vrot.slane %v294, %v298
      %v301 = vadd.f32 %v292, %v299
      %v302 = vadd.f32 %v293, %v299
      %303 = vst [vmem:[%s5] sm:$0xff] %v301
      %304 = vst [vmem:[%s5 + $0x8] sm:$0xff] %v302
    $region37: #{_final_classifier_forward.1} parent=1 // pred_fallthru
      _
    // Predicated region
    $region38: #{_final_classifier_forward.1} parent=1 // pred_check
      _
    $region39: #{_final_classifier_forward.1} parent=1 // pred_check_branch
      %306 = sbr.rel (0) target = $region41
    $region40: #{_final_classifier_forward.1} parent=1 // pred_region
      _
    $region41: #{_final_classifier_forward.1} parent=1 // pred_fallthru
      _
    // Predicated region
    $region42: #{_final_classifier_forward.1} parent=1 // pred_check
      _
    $region43: #{_final_classifier_forward.1} parent=1 // pred_check_branch
      %308 = sbr.rel (0) target = $region45
    $region44: #{_final_classifier_forward.1} parent=1 // pred_region
      _
    $region45: #{_final_classifier_forward.1} parent=1 // pred_fallthru
      _
    %309 = vsyncpa [#allocation4], 1
    %310 = vsyncpa [#allocation6], 1

</llo_original>
